<compile_context>
chip_gen: v5e
topology: v5e:2x2
jax: 0.10.0
libtpu: 0.0.40
codegen_flags: <defaults>
</compile_context>

<pallas_src>
import functools

import jax
import jax.numpy as jnp
from jax.experimental import pallas as pl
from jax.experimental.pallas import tpu as pltpu


def _round_up(n: int, m: int) -> int:
    return ((n + m - 1) // m) * m


def _pick_b_tile(batch: int) -> int:
    """Largest 128-multiple tile <= 2048 that still leaves >=2 grid tiles
    (v7x has 2 TensorCores and only the parallel grid axis spreads across
    them); for small batches fall back to a single 128-row tile."""
    b_cap = _round_up(batch, 128)
    t = min(2048, b_cap)
    while t > 128 and b_cap < 2 * t:
        t //= 2
    return max(t, 128)


def _afm_kernel(x_ref, w1_ref, b1_ref, w2_ref, sc_ref, o_ref, *,
                num_fields, embed_dim, attn_size):
    """One batch tile of the attentional FM.

    x_ref : (B_TILE, F*D)        lane-dense embeddings (VMEM)
    w1_ref: (P*D, P*A + P) bf16  block-diag [attention | fc] weight
    b1_ref: (1, P*A)             attention bias tiled over pairs
    w2_ref: (P*A, P)       bf16  block-diag projection weight
    sc_ref: (1,) SMEM            [fc bias]
    o_ref : (B_TILE, 1)          per-row output
    """
    nf, d, a = num_fields, embed_dim, attn_size
    p_cnt = nf * (nf - 1) // 2
    pa = p_cnt * a

    x = x_ref[...]                                        # (B_TILE, F*D)
    fields = [x[:, i * d:(i + 1) * d] for i in range(nf)]

    # Pairwise element-wise products, lane-concatenated into one (B_TILE, P*D)
    # slab.  Fully unrolled -- fine for small F; for F >= ~10 this should
    # become a chunked fori_loop over a precomputed pair-index table.
    prods = []
    for i in range(nf - 1):
        for j in range(i + 1, nf):
            prods.append(fields[i] * fields[j])
    p_cat = jnp.concatenate(prods, axis=-1).astype(jnp.bfloat16)

    # Single batched block-diagonal matmul (bf16 operands, f32 accumulate):
    #   columns [k*A, (k+1)*A) -> attention hidden state of pair k (pre-bias)
    #   column  P*A + k        -> s_k = p_k . w_fc   (fc weight folded in)
    y = jnp.dot(p_cat, w1_ref[...], preferred_element_type=jnp.float32)

    hidden = jnp.maximum(y[:, :pa] + b1_ref[...], 0.0)    # ReLU, f32
    s_cols = y[:, pa:]                                    # (B_TILE, P), f32

    # Block-diagonal projection -> lane-dense per-pair logits (B_TILE, P).
    # The projection bias is omitted: softmax over the pair axis is
    # shift-invariant, so it cannot change the result.
    logits = jnp.dot(hidden.astype(jnp.bfloat16), w2_ref[...],
                     preferred_element_type=jnp.float32)

    m = jnp.max(logits, axis=-1, keepdims=True)
    e = jnp.exp(logits - m)
    den = jnp.sum(e, axis=-1, keepdims=True)
    attn = e * pl.reciprocal(den, approx=True)
    # TODO(synk): training-mode dropout (on attention weights and attn_output)
    # is not implemented; this is the inference (training=False) path.

    out = jnp.sum(attn * s_cols, axis=-1, keepdims=True) + sc_ref[0]
    o_ref[...] = out.astype(o_ref.dtype)


def attentional_factorization_machine(x, attn_w, attn_b, proj_w, proj_b,
                                      fc_w, fc_b, *, b_tile=None):
    """x: (B, F, D). Weights in PyTorch nn.Linear layout:
       attn_w (A, D), attn_b (A,), proj_w (1, A), proj_b (1,),
       fc_w (1, D), fc_b (1,).  Returns (B, 1)."""
    B, F, D = x.shape
    assert F >= 2, "AttentionalFactorizationMachine needs at least 2 fields"
    A = attn_w.shape[0]
    P = F * (F - 1) // 2
    PA = P * A
    N1 = PA + P
    FD = F * D

    if b_tile is None:
        b_tile = _pick_b_tile(B)
    num_tiles = pl.cdiv(B, b_tile)
    b_pad = num_tiles * b_tile

    # Lane-dense streamed input: (B, F, D) -> (B, F*D) is free for row-major.
    x2 = x.reshape(B, FD)
    if b_pad != B:
        x2 = jnp.pad(x2, ((0, b_pad - B), (0, 0)))

    # ---- weight prep: block-diagonal over pairs, fc folded into matmul 1 ----
    wa_t = jnp.asarray(attn_w, jnp.float32).T            # (D, A)
    wf_v = jnp.asarray(fc_w, jnp.float32).reshape(D)     # (D,)
    wp_v = jnp.asarray(proj_w, jnp.float32).reshape(A)   # (A,)
    # proj_b is intentionally unused: softmax over pairs is shift-invariant.
    w1 = jnp.zeros((P * D, N1), jnp.float32)
    w2 = jnp.zeros((PA, P), jnp.float32)
    for k in range(P):
        w1 = w1.at[k * D:(k + 1) * D, k * A:(k + 1) * A].set(wa_t)
        w1 = w1.at[k * D:(k + 1) * D, PA + k].set(wf_v)
        w2 = w2.at[k * A:(k + 1) * A, k].set(wp_v)
    w1 = w1.astype(jnp.bfloat16)
    w2 = w2.astype(jnp.bfloat16)
    b1 = jnp.tile(jnp.asarray(attn_b, jnp.float32).reshape(1, A), (1, P))
    sc = jnp.asarray(fc_b, jnp.float32).reshape(1)        # SMEM scalar [fc_b]

    # ---- VMEM budget from actual buffer math (stays valid on v7x's 64 MiB) --
    itemsize = x2.dtype.itemsize
    in_tile = b_tile * FD * itemsize                      # per input buffer
    out_tile = b_tile * 128 * itemsize                    # (b_tile,1) lane-padded
    w_bytes = (w1.size + w2.size) * 2 + b1.size * 4 + 16
    tmp_bytes = b_tile * (P * D * (4 + 2) + N1 * 4 + PA * (4 + 2) + P * 16 + 64)
    vmem_limit = int(min(56 << 20,
                         max(2 * (in_tile + out_tile) + w_bytes + tmp_bytes
                             + (4 << 20),
                             24 << 20)))

    flops_per_row = (P * D + 2 * P * D * N1 + 2 * PA + 2 * PA * P + 8 * P + 4)
    cost = pl.CostEstimate(
        flops=int(b_pad * flops_per_row),
        transcendentals=int(b_pad * (P + 1)),
        bytes_accessed=int(x2.size * itemsize + (w1.size + w2.size) * 2
                           + b1.size * 4 + 4 + b_pad * itemsize))

    kernel = functools.partial(_afm_kernel, num_fields=F, embed_dim=D,
                               attn_size=A)

    out = pl.pallas_call(
        kernel,
        out_shape=jax.ShapeDtypeStruct((b_pad, 1), x2.dtype),
        grid_spec=pltpu.PrefetchScalarGridSpec(
            num_scalar_prefetch=0,
            grid=(num_tiles,),
            in_specs=[
                pl.BlockSpec((b_tile, FD), lambda i: (i, 0)),      # batch tile
                pl.BlockSpec((P * D, N1), lambda i: (0, 0)),       # [attn|fc] blk-diag
                pl.BlockSpec((1, PA), lambda i: (0, 0)),           # attn bias (tiled)
                pl.BlockSpec((PA, P), lambda i: (0, 0)),           # proj blk-diag
                pl.BlockSpec(memory_space=pltpu.MemorySpace.SMEM), # [fc_b]
            ],
            out_specs=pl.BlockSpec((b_tile, 1), lambda i: (i, 0)),
        ),
        compiler_params=pltpu.CompilerParams(
            dimension_semantics=("parallel",),   # independent batch tiles
            vmem_limit_bytes=vmem_limit,
        ),
        cost_estimate=cost,
    )(x2, w1, b1, w2, sc)

    return out[:B]


def _reference(x, attn_w, attn_b, proj_w, proj_b, fc_w, fc_b):
    """Pure-JAX port of the PyTorch forward (eval mode)."""
    B, F, D = x.shape
    row, col = [], []
    for i in range(F - 1):
        for j in range(i + 1, F):
            row.append(i)
            col.append(j)
    p = x[:, jnp.array(row), :]
    q = x[:, jnp.array(col), :]
    inner = p * q                                          # (B, P, D)
    h = jax.nn.relu(inner @ attn_w.T + attn_b)             # (B, P, A)
    logits = h @ proj_w.T + proj_b                         # (B, P, 1)
    attn = jax.nn.softmax(logits, axis=1)
    attn_out = jnp.sum(attn * inner, axis=1)               # (B, D)
    return attn_out @ fc_w.T + fc_b                        # (B, 1)


if __name__ == "__main__":
    key = jax.random.PRNGKey(0)
    B, F, D, A = 2, 4, 32, 16   # batch, num_fields, embed_dim, attn_size
    ks = jax.random.split(key, 7)
    x = jax.random.normal(ks[0], (B, F, D), dtype=jnp.float32)
    attn_w = 0.1 * jax.random.normal(ks[1], (A, D), dtype=jnp.float32)
    attn_b = 0.1 * jax.random.normal(ks[2], (A,), dtype=jnp.float32)
    proj_w = 0.1 * jax.random.normal(ks[3], (1, A), dtype=jnp.float32)
    proj_b = 0.1 * jax.random.normal(ks[4], (1,), dtype=jnp.float32)
    fc_w = 0.1 * jax.random.normal(ks[5], (1, D), dtype=jnp.float32)
    fc_b = 0.1 * jax.random.normal(ks[6], (1,), dtype=jnp.float32)

    out = attentional_factorization_machine(
        x, attn_w, attn_b, proj_w, proj_b, fc_w, fc_b)
    out = jax.block_until_ready(out)

    ref = _reference(x, attn_w, attn_b, proj_w, proj_b, fc_w, fc_b)
    assert out.shape == (B, 1), out.shape
    # bf16 MXU operands (f32 accumulate) => slightly looser tolerance vs f32 ref
    assert jnp.allclose(out, ref, atol=2e-2, rtol=2e-2), (out, ref)

    print("KERNEL_OK")
</pallas_src>

<mosaic_0001>
module attributes {stable_mosaic.version = 11 : i64} {
  func.func @_afm_kernel(%arg0: i32, %arg1: memref<128x128xf32, #tpu.memory_space<vmem>>, %arg2: memref<192x102xbf16, #tpu.memory_space<vmem>>, %arg3: memref<1x96xf32, #tpu.memory_space<vmem>>, %arg4: memref<96x6xbf16, #tpu.memory_space<vmem>>, %arg5: memref<1xf32, #tpu.memory_space<smem>>, %arg6: memref<128x1xf32, #tpu.memory_space<vmem>>) attributes {dimension_semantics = [#tpu.dimension_semantics<parallel>], iteration_bounds = array<i64: 1>, scalar_prefetch = 0 : i64, scratch_operands = 0 : i64, tpu.core_type = #tpu.core_type<tc>, window_params = [{transform_indices = @transform_0, window_bounds = array<i64: 128, 128>}, {pipeline_mode = #tpu.pipeline_mode<synchronous>, transform_indices = @transform_1, window_bounds = array<i64: 192, 102>}, {pipeline_mode = #tpu.pipeline_mode<synchronous>, transform_indices = @transform_2, window_bounds = array<i64: 1, 96>}, {pipeline_mode = #tpu.pipeline_mode<synchronous>, transform_indices = @transform_3, window_bounds = array<i64: 96, 6>}, {transform_indices = @transform_4, window_bounds = array<i64: 1>}, {transform_indices = @transform_5, window_bounds = array<i64: 128, 1>}]} {
    %c0 = arith.constant 0 : index
    %c0_0 = arith.constant 0 : index
    %0 = vector.load %arg1[%c0, %c0_0] : memref<128x128xf32, #tpu.memory_space<vmem>>, vector<128x128xf32>
    %1 = vector.extract_strided_slice %0 {offsets = [0, 0], sizes = [128, 32], strides = [1, 1]} : vector<128x128xf32> to vector<128x32xf32>
    %2 = vector.extract_strided_slice %0 {offsets = [0, 32], sizes = [128, 32], strides = [1, 1]} : vector<128x128xf32> to vector<128x32xf32>
    %3 = vector.extract_strided_slice %0 {offsets = [0, 64], sizes = [128, 32], strides = [1, 1]} : vector<128x128xf32> to vector<128x32xf32>
    %4 = vector.extract_strided_slice %0 {offsets = [0, 96], sizes = [128, 32], strides = [1, 1]} : vector<128x128xf32> to vector<128x32xf32>
    %5 = arith.mulf %1, %2 : vector<128x32xf32>
    %6 = arith.mulf %1, %3 : vector<128x32xf32>
    %7 = arith.mulf %1, %4 : vector<128x32xf32>
    %8 = arith.mulf %2, %3 : vector<128x32xf32>
    %9 = arith.mulf %2, %4 : vector<128x32xf32>
    %10 = arith.mulf %3, %4 : vector<128x32xf32>
    %11 = tpu.concatenate %5, %6, %7, %8, %9, %10 in 1 : vector<128x32xf32>, vector<128x32xf32>, vector<128x32xf32>, vector<128x32xf32>, vector<128x32xf32>, vector<128x32xf32> -> vector<128x192xf32>
    %12 = arith.truncf %11 : vector<128x192xf32> to vector<128x192xbf16>
    %c0_1 = arith.constant 0 : index
    %c0_2 = arith.constant 0 : index
    %13 = vector.load %arg2[%c0_1, %c0_2] : memref<192x102xbf16, #tpu.memory_space<vmem>>, vector<192x102xbf16>
    %cst = arith.constant dense<0.000000e+00> : vector<128x102xf32>
    %14 = tpu.matmul %12, %13, %cst {dimension_numbers = #tpu.dot_dimension_numbers<[1], [0], [0], [1], [0, 0, 1, 1], [], []>} : vector<128x192xbf16>, vector<192x102xbf16>, vector<128x102xf32> -> vector<128x102xf32>
    %15 = vector.extract_strided_slice %14 {offsets = [0, 0], sizes = [128, 96], strides = [1, 1]} : vector<128x102xf32> to vector<128x96xf32>
    %c0_3 = arith.constant 0 : index
    %c0_4 = arith.constant 0 : index
    %16 = vector.load %arg3[%c0_3, %c0_4] : memref<1x96xf32, #tpu.memory_space<vmem>>, vector<1x96xf32>
    %17 = vector.broadcast %16 : vector<1x96xf32> to vector<128x96xf32>
    %18 = arith.addf %15, %17 : vector<128x96xf32>
    %cst_5 = arith.constant 0.000000e+00 : f32
    %19 = vector.broadcast %cst_5 : f32 to vector<128x96xf32>
    %20 = arith.maximumf %18, %19 : vector<128x96xf32>
    %21 = vector.extract_strided_slice %14 {offsets = [0, 96], sizes = [128, 6], strides = [1, 1]} : vector<128x102xf32> to vector<128x6xf32>
    %22 = arith.truncf %20 : vector<128x96xf32> to vector<128x96xbf16>
    %c0_6 = arith.constant 0 : index
    %c0_7 = arith.constant 0 : index
    %23 = vector.load %arg4[%c0_6, %c0_7] : memref<96x6xbf16, #tpu.memory_space<vmem>>, vector<96x6xbf16>
    %cst_8 = arith.constant dense<0.000000e+00> : vector<128x6xf32>
    %24 = tpu.matmul %22, %23, %cst_8 {dimension_numbers = #tpu.dot_dimension_numbers<[1], [0], [0], [1], [0, 0, 1, 1], [], []>} : vector<128x96xbf16>, vector<96x6xbf16>, vector<128x6xf32> -> vector<128x6xf32>
    %cst_9 = arith.constant dense<0xFF800000> : vector<128xf32>
    %25 = vector.multi_reduction <maximumf>, %24, %cst_9 [1] : vector<128x6xf32> to vector<128xf32>
    %26 = vector.shape_cast %25 : vector<128xf32> to vector<128x1xf32>
    %27 = vector.broadcast %26 : vector<128x1xf32> to vector<128x6xf32>
    %28 = arith.subf %24, %27 : vector<128x6xf32>
    %29 = math.exp %28 : vector<128x6xf32>
    %cst_10 = arith.constant dense<0.000000e+00> : vector<128xf32>
    %30 = vector.multi_reduction <add>, %29, %cst_10 [1] : vector<128x6xf32> to vector<128xf32>
    %31 = vector.shape_cast %30 : vector<128xf32> to vector<128x1xf32>
    %32 = tpu.reciprocal %31 {approx = true} : vector<128x1xf32> -> vector<128x1xf32>
    %33 = vector.broadcast %32 : vector<128x1xf32> to vector<128x6xf32>
    %34 = arith.mulf %29, %33 : vector<128x6xf32>
    %35 = arith.mulf %34, %21 : vector<128x6xf32>
    %cst_11 = arith.constant dense<0.000000e+00> : vector<128xf32>
    %36 = vector.multi_reduction <add>, %35, %cst_11 [1] : vector<128x6xf32> to vector<128xf32>
    %37 = vector.shape_cast %36 : vector<128xf32> to vector<128x1xf32>
    %c0_12 = arith.constant 0 : index
    %38 = memref.load %arg5[%c0_12] : memref<1xf32, #tpu.memory_space<smem>>
    %39 = vector.broadcast %38 : f32 to vector<128x1xf32>
    %40 = arith.addf %37, %39 : vector<128x1xf32>
    %c0_13 = arith.constant 0 : index
    %c0_14 = arith.constant 0 : index
    %41 = vector.load %arg6[%c0_13, %c0_14] : memref<128x1xf32, #tpu.memory_space<vmem>>, vector<128x1xf32>
    tpu.vector_store %arg6[%c0_13, %c0_14], %40 {strides = array<i32>} : memref<128x1xf32, #tpu.memory_space<vmem>>, vector<128x1xf32>,
    return
  }
  func.func @transform_0(%arg0: i32) -> (i32, i32) {
    %c0_i32 = arith.constant 0 : i32
    %c0_i32_0 = arith.constant 0 : i32
    return %arg0, %c0_i32 : i32, i32
  }
  func.func @transform_1(%arg0: i32) -> (i32, i32) {
    %c0_i32 = arith.constant 0 : i32
    %c0_i32_0 = arith.constant 0 : i32
    %c0_i32_1 = arith.constant 0 : i32
    return %c0_i32, %c0_i32_0 : i32, i32
  }
  func.func @transform_2(%arg0: i32) -> (i32, i32) {
    %c0_i32 = arith.constant 0 : i32
    %c0_i32_0 = arith.constant 0 : i32
    %c0_i32_1 = arith.constant 0 : i32
    return %c0_i32, %c0_i32_0 : i32, i32
  }
  func.func @transform_3(%arg0: i32) -> (i32, i32) {
    %c0_i32 = arith.constant 0 : i32
    %c0_i32_0 = arith.constant 0 : i32
    %c0_i32_1 = arith.constant 0 : i32
    return %c0_i32, %c0_i32_0 : i32, i32
  }
  func.func @transform_4(%arg0: i32) -> i32 {
    %c0_i32 = arith.constant 0 : i32
    %c0_i32_0 = arith.constant 0 : i32
    return %c0_i32 : i32
  }
  func.func @transform_5(%arg0: i32) -> (i32, i32) {
    %c0_i32 = arith.constant 0 : i32
    %c0_i32_0 = arith.constant 0 : i32
    return %arg0, %c0_i32 : i32, i32
  }
}

</mosaic_0001>

<llo_original>
// kernel: tpu_custom_call.1
$region0: #{tpu_custom_call.1}
  #allocation0 [shape = 'u32[]', space=smem, size = 0x4, offset = 0x4, fixed_abs, tag = 'smem constant byte address 0x4 - core index']
  #allocation1 [shape = 'u32[72,128]{1,0:T(1,128)}', space=vmem, size = 0x9000, scoped, tag = 'internal scratch']
  #allocation2 [shape = 'f32[1]{0:T(128)S(6)}', space=smem, size = 0x200, scoped, tag = 'scoped memory for tpu_custom_call.1']
  %s0 = inlined_call_operand.hbm [shape: f32[128,128], index: 0, kind: input, shape index: {}]
  %s1 = inlined_call_operand.hbm [shape: bf16[192,102], index: 1, kind: input, shape index: {}]
  %s2 = inlined_call_operand.vmem [shape: f32[1,96], index: 2, kind: input, shape index: {}]
  %s3 = inlined_call_operand.vmem [shape: bf16[96,6], index: 3, kind: input, shape index: {}]
  %s4 = inlined_call_operand.<no memory space> [shape: f32[1], index: 4, kind: input, shape index: {}]
  %s5 = inlined_call_operand.vmem [shape: f32[128,1], index: 5, kind: output, shape index: {}]
  %s6 = sld [smem:[#allocation0]]
  $region38: #{tpu_custom_call.1} parent=0
    _
  %s8 = ssub.s32 1, %s6
  %s9 = scalar_select 0, %s8, %s6
  %10 = sst [smem:[#allocation2]] %s4
  $region1: #{tpu_custom_call.1} parent=0
    #allocation3 [shape = 'u8[65536]{0}', space=vmem, size = 0x10000, scoped, tag = 'input window, operand 0, single buffered']
    #allocation4 [shape = 's32[1]{0}', space=sflag, size = 0x4, scoped, tag = 'scoped memory for tpu_custom_call.1']
    #allocation5 [shape = 'u8[49152]{0}', space=vmem, size = 0xc000, scoped, tag = 'input window, operand 1, single buffered']
    #allocation6 [shape = 's32[1]{0}', space=sflag, size = 0x4, scoped, tag = 'scoped memory for tpu_custom_call.1']
    %11 = vsyncpa [#allocation4], 0
    %12 = vsyncpa [#allocation6], 0
    // Predicated region
    $region2: #{tpu_custom_call.1} parent=1 // pred_check
      _
    $region3: #{tpu_custom_call.1} parent=1 // pred_check_branch
      %14 = sbr.rel (0) target = $region5
    $region4: #{tpu_custom_call.1} parent=1 // pred_region
      %16 = vsyncadd [#allocation4], 0
      %s17 = sshll.u32 %s0, 4
      %s18 = int_to_ptr.hbm [resolvable:$true] %s17
      %s19 = sshll.u32 [#allocation3], 4
      %s20 = int_to_ptr.vmem [resolvable:$true] %s19
      %25 = dma.hbm_to_vmem [thread:$0]  %s18, 2048, %s20, [#allocation4], 128, 128, 8
    $region5: #{tpu_custom_call.1} parent=1 // pred_fallthru
      _
    // Predicated region
    $region6: #{tpu_custom_call.1} parent=1 // pred_check
      _
    $region7: #{tpu_custom_call.1} parent=1 // pred_check_branch
      %27 = sbr.rel (0) target = $region9
    $region8: #{tpu_custom_call.1} parent=1 // pred_region
      %29 = vsyncadd [#allocation6], 0
      %s30 = sshll.u32 %s1, 4
      %s31 = int_to_ptr.hbm [resolvable:$true] %s30
      %s32 = sshll.u32 [#allocation5], 4
      %s33 = int_to_ptr.vmem [resolvable:$true] %s32
      %38 = dma.hbm_to_vmem [thread:$0]  %s31, 1536, %s33, [#allocation6], 64, 64, 4
    $region9: #{tpu_custom_call.1} parent=1 // pred_fallthru
      _
    // Predicated region
    $region10: #{tpu_custom_call.1} parent=1 // pred_check
      _
    $region11: #{tpu_custom_call.1} parent=1 // pred_check_branch
      %40 = sbr.rel (0) target = $region13
    $region12: #{tpu_custom_call.1} parent=1 // pred_region
      _
    $region13: #{tpu_custom_call.1} parent=1 // pred_fallthru
      _
    // Predicated region
    $region14: #{tpu_custom_call.1} parent=1 // pred_check
      _
    $region15: #{tpu_custom_call.1} parent=1 // pred_check_branch
      %42 = sbr.rel (0) target = $region17
    $region16: #{tpu_custom_call.1} parent=1 // pred_region
      _
    $region17: #{tpu_custom_call.1} parent=1 // pred_fallthru
      _
    // Predicated region
    $region18: #{tpu_custom_call.1} parent=1 // pred_check
      _
    $region19: #{tpu_custom_call.1} parent=1 // pred_check_branch
      %44 = sbr.rel (0) target = $region21
    $region20: #{tpu_custom_call.1} parent=1 // pred_region
      _
    $region21: #{tpu_custom_call.1} parent=1 // pred_fallthru
      _
    // Predicated region
    $region22: #{tpu_custom_call.1} parent=1 // pred_check
      _
    $region23: #{tpu_custom_call.1} parent=1 // pred_check_branch
      %46 = sbr.rel (0) target = $region25
    $region24: #{tpu_custom_call.1} parent=1 // pred_region
      %48 = dma.done [#allocation4], 2048
    $region25: #{tpu_custom_call.1} parent=1 // pred_fallthru
      _
    // Predicated region
    $region26: #{tpu_custom_call.1} parent=1 // pred_check
      _
    $region27: #{tpu_custom_call.1} parent=1 // pred_check_branch
      %50 = sbr.rel (0) target = $region29
    $region28: #{tpu_custom_call.1} parent=1 // pred_region
      %52 = dma.done [#allocation6], 1536
    $region29: #{tpu_custom_call.1} parent=1 // pred_fallthru
      _
    %v54 = vld [vmem:[#allocation3] sm:$0xff]
    %v55 = vld [vmem:[#allocation3 + $0x8] sm:$0xff]
    %v56 = vld [vmem:[#allocation3 + $0x10] sm:$0xff]
    %v57 = vld [vmem:[#allocation3 + $0x18] sm:$0xff]
    %v58 = vld [vmem:[#allocation3 + $0x20] sm:$0xff]
    %v59 = vld [vmem:[#allocation3 + $0x28] sm:$0xff]
    %v60 = vld [vmem:[#allocation3 + $0x30] sm:$0xff]
    %v61 = vld [vmem:[#allocation3 + $0x38] sm:$0xff]
    %v62 = vld [vmem:[#allocation3 + $0x40] sm:$0xff]
    %v63 = vld [vmem:[#allocation3 + $0x48] sm:$0xff]
    %v64 = vld [vmem:[#allocation3 + $0x50] sm:$0xff]
    %v65 = vld [vmem:[#allocation3 + $0x58] sm:$0xff]
    %v66 = vld [vmem:[#allocation3 + $0x60] sm:$0xff]
    %v67 = vld [vmem:[#allocation3 + $0x68] sm:$0xff]
    %v68 = vld [vmem:[#allocation3 + $0x70] sm:$0xff]
    %v69 = vld [vmem:[#allocation3 + $0x78] sm:$0xff]
    %86 = vrot.lane.b32.xlu0 %v54, 96
    %v87 = vpop.permute.xlu0 %86
    %88 = vrot.lane.b32.xlu0 %v55, 96
    %v89 = vpop.permute.xlu0 %88
    %90 = vrot.lane.b32.xlu0 %v56, 96
    %v91 = vpop.permute.xlu0 %90
    %92 = vrot.lane.b32.xlu0 %v57, 96
    %v93 = vpop.permute.xlu0 %92
    %94 = vrot.lane.b32.xlu0 %v58, 96
    %v95 = vpop.permute.xlu0 %94
    %96 = vrot.lane.b32.xlu0 %v59, 96
    %v97 = vpop.permute.xlu0 %96
    %98 = vrot.lane.b32.xlu0 %v60, 96
    %v99 = vpop.permute.xlu0 %98
    %100 = vrot.lane.b32.xlu0 %v61, 96
    %v101 = vpop.permute.xlu0 %100
    %102 = vrot.lane.b32.xlu0 %v62, 96
    %v103 = vpop.permute.xlu0 %102
    %104 = vrot.lane.b32.xlu0 %v63, 96
    %v105 = vpop.permute.xlu0 %104
    %106 = vrot.lane.b32.xlu0 %v64, 96
    %v107 = vpop.permute.xlu0 %106
    %108 = vrot.lane.b32.xlu0 %v65, 96
    %v109 = vpop.permute.xlu0 %108
    %110 = vrot.lane.b32.xlu0 %v66, 96
    %v111 = vpop.permute.xlu0 %110
    %112 = vrot.lane.b32.xlu0 %v67, 96
    %v113 = vpop.permute.xlu0 %112
    %114 = vrot.lane.b32.xlu0 %v68, 96
    %v115 = vpop.permute.xlu0 %114
    %116 = vrot.lane.b32.xlu0 %v69, 96
    %v117 = vpop.permute.xlu0 %116
    %v134 = vmul.f32 %v54, %v87
    %v135 = vmul.f32 %v55, %v89
    %v136 = vmul.f32 %v56, %v91
    %v137 = vmul.f32 %v57, %v93
    %v138 = vmul.f32 %v58, %v95
    %v139 = vmul.f32 %v59, %v97
    %v140 = vmul.f32 %v60, %v99
    %v141 = vmul.f32 %v61, %v101
    %v142 = vmul.f32 %v62, %v103
    %v143 = vmul.f32 %v63, %v105
    %v144 = vmul.f32 %v64, %v107
    %v145 = vmul.f32 %v65, %v109
    %v146 = vmul.f32 %v66, %v111
    %v147 = vmul.f32 %v67, %v113
    %v148 = vmul.f32 %v68, %v115
    %v149 = vmul.f32 %v69, %v117
    %150 = vrot.lane.b32.xlu0 %v54, 64
    %v151 = vpop.permute.xlu0 %150
    %152 = vrot.lane.b32.xlu0 %v55, 64
    %v153 = vpop.permute.xlu0 %152
    %154 = vrot.lane.b32.xlu0 %v56, 64
    %v155 = vpop.permute.xlu0 %154
    %156 = vrot.lane.b32.xlu0 %v57, 64
    %v157 = vpop.permute.xlu0 %156
    %158 = vrot.lane.b32.xlu0 %v58, 64
    %v159 = vpop.permute.xlu0 %158
    %160 = vrot.lane.b32.xlu0 %v59, 64
    %v161 = vpop.permute.xlu0 %160
    %162 = vrot.lane.b32.xlu0 %v60, 64
    %v163 = vpop.permute.xlu0 %162
    %164 = vrot.lane.b32.xlu0 %v61, 64
    %v165 = vpop.permute.xlu0 %164
    %166 = vrot.lane.b32.xlu0 %v62, 64
    %v167 = vpop.permute.xlu0 %166
    %168 = vrot.lane.b32.xlu0 %v63, 64
    %v169 = vpop.permute.xlu0 %168
    %170 = vrot.lane.b32.xlu0 %v64, 64
    %v171 = vpop.permute.xlu0 %170
    %172 = vrot.lane.b32.xlu0 %v65, 64
    %v173 = vpop.permute.xlu0 %172
    %174 = vrot.lane.b32.xlu0 %v66, 64
    %v175 = vpop.permute.xlu0 %174
    %176 = vrot.lane.b32.xlu0 %v67, 64
    %v177 = vpop.permute.xlu0 %176
    %178 = vrot.lane.b32.xlu0 %v68, 64
    %v179 = vpop.permute.xlu0 %178
    %180 = vrot.lane.b32.xlu0 %v69, 64
    %v181 = vpop.permute.xlu0 %180
    %v198 = vmul.f32 %v54, %v151
    %v199 = vmul.f32 %v55, %v153
    %v200 = vmul.f32 %v56, %v155
    %v201 = vmul.f32 %v57, %v157
    %v202 = vmul.f32 %v58, %v159
    %v203 = vmul.f32 %v59, %v161
    %v204 = vmul.f32 %v60, %v163
    %v205 = vmul.f32 %v61, %v165
    %v206 = vmul.f32 %v62, %v167
    %v207 = vmul.f32 %v63, %v169
    %v208 = vmul.f32 %v64, %v171
    %v209 = vmul.f32 %v65, %v173
    %v210 = vmul.f32 %v66, %v175
    %v211 = vmul.f32 %v67, %v177
    %v212 = vmul.f32 %v68, %v179
    %v213 = vmul.f32 %v69, %v181
    %214 = vrot.lane.b32.xlu0 %v54, 32
    %v215 = vpop.permute.xlu0 %214
    %216 = vrot.lane.b32.xlu0 %v55, 32
    %v217 = vpop.permute.xlu0 %216
    %218 = vrot.lane.b32.xlu0 %v56, 32
    %v219 = vpop.permute.xlu0 %218
    %220 = vrot.lane.b32.xlu0 %v57, 32
    %v221 = vpop.permute.xlu0 %220
    %222 = vrot.lane.b32.xlu0 %v58, 32
    %v223 = vpop.permute.xlu0 %222
    %224 = vrot.lane.b32.xlu0 %v59, 32
    %v225 = vpop.permute.xlu0 %224
    %226 = vrot.lane.b32.xlu0 %v60, 32
    %v227 = vpop.permute.xlu0 %226
    %228 = vrot.lane.b32.xlu0 %v61, 32
    %v229 = vpop.permute.xlu0 %228
    %230 = vrot.lane.b32.xlu0 %v62, 32
    %v231 = vpop.permute.xlu0 %230
    %232 = vrot.lane.b32.xlu0 %v63, 32
    %v233 = vpop.permute.xlu0 %232
    %234 = vrot.lane.b32.xlu0 %v64, 32
    %v235 = vpop.permute.xlu0 %234
    %236 = vrot.lane.b32.xlu0 %v65, 32
    %v237 = vpop.permute.xlu0 %236
    %238 = vrot.lane.b32.xlu0 %v66, 32
    %v239 = vpop.permute.xlu0 %238
    %240 = vrot.lane.b32.xlu0 %v67, 32
    %v241 = vpop.permute.xlu0 %240
    %242 = vrot.lane.b32.xlu0 %v68, 32
    %v243 = vpop.permute.xlu0 %242
    %244 = vrot.lane.b32.xlu0 %v69, 32
    %v245 = vpop.permute.xlu0 %244
    %v262 = vmul.f32 %v54, %v215
    %v263 = vmul.f32 %v55, %v217
    %v264 = vmul.f32 %v56, %v219
    %v265 = vmul.f32 %v57, %v221
    %v266 = vmul.f32 %v58, %v223
    %v267 = vmul.f32 %v59, %v225
    %v268 = vmul.f32 %v60, %v227
    %v269 = vmul.f32 %v61, %v229
    %v270 = vmul.f32 %v62, %v231
    %v271 = vmul.f32 %v63, %v233
    %v272 = vmul.f32 %v64, %v235
    %v273 = vmul.f32 %v65, %v237
    %v274 = vmul.f32 %v66, %v239
    %v275 = vmul.f32 %v67, %v241
    %v276 = vmul.f32 %v68, %v243
    %v277 = vmul.f32 %v69, %v245
    %294 = vrot.lane.b32.xlu0 %v198, 32
    %v295 = vpop.permute.xlu0 %294
    %296 = vrot.lane.b32.xlu0 %v199, 32
    %v297 = vpop.permute.xlu0 %296
    %298 = vrot.lane.b32.xlu0 %v200, 32
    %v299 = vpop.permute.xlu0 %298
    %300 = vrot.lane.b32.xlu0 %v201, 32
    %v301 = vpop.permute.xlu0 %300
    %302 = vrot.lane.b32.xlu0 %v202, 32
    %v303 = vpop.permute.xlu0 %302
    %304 = vrot.lane.b32.xlu0 %v203, 32
    %v305 = vpop.permute.xlu0 %304
    %306 = vrot.lane.b32.xlu0 %v204, 32
    %v307 = vpop.permute.xlu0 %306
    %308 = vrot.lane.b32.xlu0 %v205, 32
    %v309 = vpop.permute.xlu0 %308
    %310 = vrot.lane.b32.xlu0 %v206, 32
    %v311 = vpop.permute.xlu0 %310
    %312 = vrot.lane.b32.xlu0 %v207, 32
    %v313 = vpop.permute.xlu0 %312
    %314 = vrot.lane.b32.xlu0 %v208, 32
    %v315 = vpop.permute.xlu0 %314
    %316 = vrot.lane.b32.xlu0 %v209, 32
    %v317 = vpop.permute.xlu0 %316
    %318 = vrot.lane.b32.xlu0 %v210, 32
    %v319 = vpop.permute.xlu0 %318
    %320 = vrot.lane.b32.xlu0 %v211, 32
    %v321 = vpop.permute.xlu0 %320
    %322 = vrot.lane.b32.xlu0 %v212, 32
    %v323 = vpop.permute.xlu0 %322
    %324 = vrot.lane.b32.xlu0 %v213, 32
    %v325 = vpop.permute.xlu0 %324
    %358 = vrot.lane.b32.xlu0 %v262, 64
    %v359 = vpop.permute.xlu0 %358
    %360 = vrot.lane.b32.xlu0 %v263, 64
    %v361 = vpop.permute.xlu0 %360
    %362 = vrot.lane.b32.xlu0 %v264, 64
    %v363 = vpop.permute.xlu0 %362
    %364 = vrot.lane.b32.xlu0 %v265, 64
    %v365 = vpop.permute.xlu0 %364
    %366 = vrot.lane.b32.xlu0 %v266, 64
    %v367 = vpop.permute.xlu0 %366
    %368 = vrot.lane.b32.xlu0 %v267, 64
    %v369 = vpop.permute.xlu0 %368
    %370 = vrot.lane.b32.xlu0 %v268, 64
    %v371 = vpop.permute.xlu0 %370
    %372 = vrot.lane.b32.xlu0 %v269, 64
    %v373 = vpop.permute.xlu0 %372
    %374 = vrot.lane.b32.xlu0 %v270, 64
    %v375 = vpop.permute.xlu0 %374
    %376 = vrot.lane.b32.xlu0 %v271, 64
    %v377 = vpop.permute.xlu0 %376
    %378 = vrot.lane.b32.xlu0 %v272, 64
    %v379 = vpop.permute.xlu0 %378
    %380 = vrot.lane.b32.xlu0 %v273, 64
    %v381 = vpop.permute.xlu0 %380
    %382 = vrot.lane.b32.xlu0 %v274, 64
    %v383 = vpop.permute.xlu0 %382
    %384 = vrot.lane.b32.xlu0 %v275, 64
    %v385 = vpop.permute.xlu0 %384
    %386 = vrot.lane.b32.xlu0 %v276, 64
    %v387 = vpop.permute.xlu0 %386
    %388 = vrot.lane.b32.xlu0 %v277, 64
    %v389 = vpop.permute.xlu0 %388
    %422 = vrot.lane.b32.xlu0 %v134, 64
    %v423 = vpop.permute.xlu0 %422
    %424 = vrot.lane.b32.xlu0 %v135, 64
    %v425 = vpop.permute.xlu0 %424
    %426 = vrot.lane.b32.xlu0 %v136, 64
    %v427 = vpop.permute.xlu0 %426
    %428 = vrot.lane.b32.xlu0 %v137, 64
    %v429 = vpop.permute.xlu0 %428
    %430 = vrot.lane.b32.xlu0 %v138, 64
    %v431 = vpop.permute.xlu0 %430
    %432 = vrot.lane.b32.xlu0 %v139, 64
    %v433 = vpop.permute.xlu0 %432
    %434 = vrot.lane.b32.xlu0 %v140, 64
    %v435 = vpop.permute.xlu0 %434
    %436 = vrot.lane.b32.xlu0 %v141, 64
    %v437 = vpop.permute.xlu0 %436
    %438 = vrot.lane.b32.xlu0 %v142, 64
    %v439 = vpop.permute.xlu0 %438
    %440 = vrot.lane.b32.xlu0 %v143, 64
    %v441 = vpop.permute.xlu0 %440
    %442 = vrot.lane.b32.xlu0 %v144, 64
    %v443 = vpop.permute.xlu0 %442
    %444 = vrot.lane.b32.xlu0 %v145, 64
    %v445 = vpop.permute.xlu0 %444
    %446 = vrot.lane.b32.xlu0 %v146, 64
    %v447 = vpop.permute.xlu0 %446
    %448 = vrot.lane.b32.xlu0 %v147, 64
    %v449 = vpop.permute.xlu0 %448
    %450 = vrot.lane.b32.xlu0 %v148, 64
    %v451 = vpop.permute.xlu0 %450
    %452 = vrot.lane.b32.xlu0 %v149, 64
    %v453 = vpop.permute.xlu0 %452
    %470 = vrot.lane.b32.xlu0 %v198, 96
    %v471 = vpop.permute.xlu0 %470
    %472 = vrot.lane.b32.xlu0 %v199, 96
    %v473 = vpop.permute.xlu0 %472
    %474 = vrot.lane.b32.xlu0 %v200, 96
    %v475 = vpop.permute.xlu0 %474
    %476 = vrot.lane.b32.xlu0 %v201, 96
    %v477 = vpop.permute.xlu0 %476
    %478 = vrot.lane.b32.xlu0 %v202, 96
    %v479 = vpop.permute.xlu0 %478
    %480 = vrot.lane.b32.xlu0 %v203, 96
    %v481 = vpop.permute.xlu0 %480
    %482 = vrot.lane.b32.xlu0 %v204, 96
    %v483 = vpop.permute.xlu0 %482
    %484 = vrot.lane.b32.xlu0 %v205, 96
    %v485 = vpop.permute.xlu0 %484
    %486 = vrot.lane.b32.xlu0 %v206, 96
    %v487 = vpop.permute.xlu0 %486
    %488 = vrot.lane.b32.xlu0 %v207, 96
    %v489 = vpop.permute.xlu0 %488
    %490 = vrot.lane.b32.xlu0 %v208, 96
    %v491 = vpop.permute.xlu0 %490
    %492 = vrot.lane.b32.xlu0 %v209, 96
    %v493 = vpop.permute.xlu0 %492
    %494 = vrot.lane.b32.xlu0 %v210, 96
    %v495 = vpop.permute.xlu0 %494
    %496 = vrot.lane.b32.xlu0 %v211, 96
    %v497 = vpop.permute.xlu0 %496
    %498 = vrot.lane.b32.xlu0 %v212, 96
    %v499 = vpop.permute.xlu0 %498
    %500 = vrot.lane.b32.xlu0 %v213, 96
    %v501 = vpop.permute.xlu0 %500
    %518 = vrot.lane.b32.xlu0 %v134, 96
    %v519 = vpop.permute.xlu0 %518
    %520 = vrot.lane.b32.xlu0 %v135, 96
    %v521 = vpop.permute.xlu0 %520
    %522 = vrot.lane.b32.xlu0 %v136, 96
    %v523 = vpop.permute.xlu0 %522
    %524 = vrot.lane.b32.xlu0 %v137, 96
    %v525 = vpop.permute.xlu0 %524
    %526 = vrot.lane.b32.xlu0 %v138, 96
    %v527 = vpop.permute.xlu0 %526
    %528 = vrot.lane.b32.xlu0 %v139, 96
    %v529 = vpop.permute.xlu0 %528
    %530 = vrot.lane.b32.xlu0 %v140, 96
    %v531 = vpop.permute.xlu0 %530
    %532 = vrot.lane.b32.xlu0 %v141, 96
    %v533 = vpop.permute.xlu0 %532
    %534 = vrot.lane.b32.xlu0 %v142, 96
    %v535 = vpop.permute.xlu0 %534
    %536 = vrot.lane.b32.xlu0 %v143, 96
    %v537 = vpop.permute.xlu0 %536
    %538 = vrot.lane.b32.xlu0 %v144, 96
    %v539 = vpop.permute.xlu0 %538
    %540 = vrot.lane.b32.xlu0 %v145, 96
    %v541 = vpop.permute.xlu0 %540
    %542 = vrot.lane.b32.xlu0 %v146, 96
    %v543 = vpop.permute.xlu0 %542
    %544 = vrot.lane.b32.xlu0 %v147, 96
    %v545 = vpop.permute.xlu0 %544
    %546 = vrot.lane.b32.xlu0 %v148, 96
    %v547 = vpop.permute.xlu0 %546
    %548 = vrot.lane.b32.xlu0 %v149, 96
    %v549 = vpop.permute.xlu0 %548
    %vm566 = vcmask 261120
    %v567 = vsel %vm566, %v134, %v295
    %v568 = vsel %vm566, %v135, %v297
    %v569 = vsel %vm566, %v136, %v299
    %v570 = vsel %vm566, %v137, %v301
    %v571 = vsel %vm566, %v138, %v303
    %v572 = vsel %vm566, %v139, %v305
    %v573 = vsel %vm566, %v140, %v307
    %v574 = vsel %vm566, %v141, %v309
    %v575 = vsel %vm566, %v142, %v311
    %v576 = vsel %vm566, %v143, %v313
    %v577 = vsel %vm566, %v144, %v315
    %v578 = vsel %vm566, %v145, %v317
    %v579 = vsel %vm566, %v146, %v319
    %v580 = vsel %vm566, %v147, %v321
    %v581 = vsel %vm566, %v148, %v323
    %v582 = vsel %vm566, %v149, %v325
    %vm583 = vcmask 523264
    %v584 = vsel %vm583, %v567, %v359
    %v585 = vsel %vm583, %v568, %v361
    %v586 = vsel %vm583, %v569, %v363
    %v587 = vsel %vm583, %v570, %v365
    %v588 = vsel %vm583, %v571, %v367
    %v589 = vsel %vm583, %v572, %v369
    %v590 = vsel %vm583, %v573, %v371
    %v591 = vsel %vm583, %v574, %v373
    %v592 = vsel %vm583, %v575, %v375
    %v593 = vsel %vm583, %v576, %v377
    %v594 = vsel %vm583, %v577, %v379
    %v595 = vsel %vm583, %v578, %v381
    %v596 = vsel %vm583, %v579, %v383
    %v597 = vsel %vm583, %v580, %v385
    %v598 = vsel %vm583, %v581, %v387
    %v599 = vsel %vm583, %v582, %v389
    %vm600 = vcmask 785408
    %v601 = vsel %vm600, %v584, %v423
    %v602 = vsel %vm600, %v585, %v425
    %v603 = vsel %vm600, %v586, %v427
    %v604 = vsel %vm600, %v587, %v429
    %v605 = vsel %vm600, %v588, %v431
    %v606 = vsel %vm600, %v589, %v433
    %v607 = vsel %vm600, %v590, %v435
    %v608 = vsel %vm600, %v591, %v437
    %v609 = vsel %vm600, %v592, %v439
    %v610 = vsel %vm600, %v593, %v441
    %v611 = vsel %vm600, %v594, %v443
    %v612 = vsel %vm600, %v595, %v445
    %v613 = vsel %vm600, %v596, %v447
    %v614 = vsel %vm600, %v597, %v449
    %v615 = vsel %vm600, %v598, %v451
    %v616 = vsel %vm600, %v599, %v453
    %v617 = vsel %vm566, %v471, %v519
    %v618 = vsel %vm566, %v473, %v521
    %v619 = vsel %vm566, %v475, %v523
    %v620 = vsel %vm566, %v477, %v525
    %v621 = vsel %vm566, %v479, %v527
    %v622 = vsel %vm566, %v481, %v529
    %v623 = vsel %vm566, %v483, %v531
    %v624 = vsel %vm566, %v485, %v533
    %v625 = vsel %vm566, %v487, %v535
    %v626 = vsel %vm566, %v489, %v537
    %v627 = vsel %vm566, %v491, %v539
    %v628 = vsel %vm566, %v493, %v541
    %v629 = vsel %vm566, %v495, %v543
    %v630 = vsel %vm566, %v497, %v545
    %v631 = vsel %vm566, %v499, %v547
    %v632 = vsel %vm566, %v501, %v549
    %v633 = vpack.c.bf16 %v602, %v601
    %v634 = vpack.c.bf16 %v618, %v617
    %v635 = vpack.c.bf16 %v604, %v603
    %v636 = vpack.c.bf16 %v620, %v619
    %v637 = vpack.c.bf16 %v606, %v605
    %v638 = vpack.c.bf16 %v622, %v621
    %v639 = vpack.c.bf16 %v608, %v607
    %v640 = vpack.c.bf16 %v624, %v623
    %v641 = vpack.c.bf16 %v610, %v609
    %v642 = vpack.c.bf16 %v626, %v625
    %v643 = vpack.c.bf16 %v612, %v611
    %v644 = vpack.c.bf16 %v628, %v627
    %v645 = vpack.c.bf16 %v614, %v613
    %v646 = vpack.c.bf16 %v630, %v629
    %v647 = vpack.c.bf16 %v616, %v615
    %v648 = vpack.c.bf16 %v632, %v631
    %v649 = vld [vmem:[#allocation5] sm:$0xf]
    %v650 = vld [vmem:[#allocation5 + $0x4] sm:$0xf]
    %v651 = vld [vmem:[#allocation5 + $0x8] sm:$0xf]
    %v652 = vld [vmem:[#allocation5 + $0xc] sm:$0xf]
    %v653 = vld [vmem:[#allocation5 + $0x10] sm:$0xf]
    %v654 = vld [vmem:[#allocation5 + $0x14] sm:$0xf]
    %v655 = vld [vmem:[#allocation5 + $0x18] sm:$0xf]
    %v656 = vld [vmem:[#allocation5 + $0x1c] sm:$0xf]
    %v657 = vld [vmem:[#allocation5 + $0x20] sm:$0xf]
    %v658 = vld [vmem:[#allocation5 + $0x24] sm:$0xf]
    %v659 = vld [vmem:[#allocation5 + $0x28] sm:$0xf]
    %v660 = vld [vmem:[#allocation5 + $0x2c] sm:$0xf]
    %v661 = vld [vmem:[#allocation5 + $0x30] sm:$0xf]
    %v662 = vld [vmem:[#allocation5 + $0x34] sm:$0xf]
    %v663 = vld [vmem:[#allocation5 + $0x38] sm:$0xf]
    %v664 = vld [vmem:[#allocation5 + $0x3c] sm:$0xf]
    %v665 = vld [vmem:[#allocation5 + $0x40] sm:$0xf]
    %v666 = vld [vmem:[#allocation5 + $0x44] sm:$0xf]
    %v667 = vld [vmem:[#allocation5 + $0x48] sm:$0xf]
    %v668 = vld [vmem:[#allocation5 + $0x4c] sm:$0xf]
    %v669 = vld [vmem:[#allocation5 + $0x50] sm:$0xf]
    %v670 = vld [vmem:[#allocation5 + $0x54] sm:$0xf]
    %v671 = vld [vmem:[#allocation5 + $0x58] sm:$0xf]
    %v672 = vld [vmem:[#allocation5 + $0x5c] sm:$0xf]
    %v697 = vunpack.c.l.b16 %v649
    %v698 = vunpack.c.l.b16 %v650
    %v699 = vunpack.c.l.b16 %v651
    %v700 = vunpack.c.l.b16 %v652
    %v701 = vunpack.c.l.b16 %v653
    %v702 = vunpack.c.l.b16 %v654
    %v703 = vunpack.c.l.b16 %v655
    %v704 = vunpack.c.l.b16 %v656
    %v705 = vunpack.c.l.b16 %v657
    %v706 = vunpack.c.l.b16 %v658
    %v707 = vunpack.c.l.b16 %v659
    %v708 = vunpack.c.l.b16 %v660
    %v709 = vunpack.c.l.b16 %v661
    %v710 = vunpack.c.l.b16 %v662
    %v711 = vunpack.c.l.b16 %v663
    %v712 = vunpack.c.l.b16 %v664
    %v713 = vunpack.c.l.b16 %v665
    %v714 = vunpack.c.l.b16 %v666
    %v715 = vunpack.c.l.b16 %v667
    %v716 = vunpack.c.l.b16 %v668
    %v717 = vunpack.c.l.b16 %v669
    %v718 = vunpack.c.l.b16 %v670
    %v719 = vunpack.c.l.b16 %v671
    %v720 = vunpack.c.l.b16 %v672
    %v721 = vpack.c.b16 %v698, %v697
    %v722 = vpack.c.b16 %v700, %v699
    %v723 = vpack.c.b16 %v702, %v701
    %v724 = vpack.c.b16 %v704, %v703
    %v725 = vpack.c.b16 %v706, %v705
    %v726 = vpack.c.b16 %v708, %v707
    %v727 = vpack.c.b16 %v710, %v709
    %v728 = vpack.c.b16 %v712, %v711
    %v729 = vpack.c.b16 %v714, %v713
    %v730 = vpack.c.b16 %v716, %v715
    %v731 = vpack.c.b16 %v718, %v717
    %v732 = vpack.c.b16 %v720, %v719
    %v746 = vsel %vm583, %v634, 0
    %v749 = vsel %vm583, %v636, 0
    %v752 = vsel %vm583, %v638, 0
    %v755 = vsel %vm583, %v640, 0
    %v758 = vsel %vm583, %v642, 0
    %v761 = vsel %vm583, %v644, 0
    %v764 = vsel %vm583, %v646, 0
    %v767 = vsel %vm583, %v648, 0
    %769 = vmatpush.bf16.msra.mxu0 %v728
    %770 = vmatpush.bf16.msra.mxu0 %v727
    %771 = vmatpush.bf16.msra.mxu0 %v726
    %772 = vmatpush.bf16.msra.mxu0 %v725
    %773 = vmatpush.bf16.msra.mxu0 %v724
    %774 = vmatpush.bf16.msra.mxu0 %v723
    %775 = vmatpush.bf16.msra.mxu0 %v722
    %776 = vmatpush.bf16.msra.mxu0 %v721
    %777 = vmatmul.bf16.gmra.mxu0 %v633
    %v778 = vpop.f32.mrf.mxu0
    %v779 = vadd.f32 0.0, %v778
    %v780 = vpop.f32.mrf.mxu0
    %v781 = vadd.f32 0.0, %v780
    %782 = vmatmul.bf16.gmra.mxu0 %v635
    %v783 = vpop.f32.mrf.mxu0
    %v784 = vadd.f32 0.0, %v783
    %v785 = vpop.f32.mrf.mxu0
    %v786 = vadd.f32 0.0, %v785
    %787 = vmatmul.bf16.gmra.mxu0 %v637
    %v788 = vpop.f32.mrf.mxu0
    %v789 = vadd.f32 0.0, %v788
    %v790 = vpop.f32.mrf.mxu0
    %v791 = vadd.f32 0.0, %v790
    %792 = vmatmul.bf16.gmra.mxu0 %v639
    %v793 = vpop.f32.mrf.mxu0
    %v794 = vadd.f32 0.0, %v793
    %v795 = vpop.f32.mrf.mxu0
    %v796 = vadd.f32 0.0, %v795
    %797 = vmatmul.bf16.gmra.mxu0 %v641
    %v798 = vpop.f32.mrf.mxu0
    %v799 = vadd.f32 0.0, %v798
    %v800 = vpop.f32.mrf.mxu0
    %v801 = vadd.f32 0.0, %v800
    %802 = vmatmul.bf16.gmra.mxu0 %v643
    %v803 = vpop.f32.mrf.mxu0
    %v804 = vadd.f32 0.0, %v803
    %v805 = vpop.f32.mrf.mxu0
    %v806 = vadd.f32 0.0, %v805
    %807 = vmatmul.bf16.gmra.mxu0 %v645
    %v808 = vpop.f32.mrf.mxu0
    %v809 = vadd.f32 0.0, %v808
    %v810 = vpop.f32.mrf.mxu0
    %v811 = vadd.f32 0.0, %v810
    %812 = vmatmul.bf16.gmra.mxu0 %v647
    %v813 = vpop.f32.mrf.mxu0
    %v814 = vadd.f32 0.0, %v813
    %v815 = vpop.f32.mrf.mxu0
    %v816 = vadd.f32 0.0, %v815
    %817 = vdwg.mxu0
    %818 = vmatpush.bf16.msra.mxu0 0
    %819 = vmatpush.bf16.msra.mxu0 0
    %820 = vmatpush.bf16.msra.mxu0 0
    %821 = vmatpush.bf16.msra.mxu0 0
    %822 = vmatpush.bf16.msra.mxu0 %v732
    %823 = vmatpush.bf16.msra.mxu0 %v731
    %824 = vmatpush.bf16.msra.mxu0 %v730
    %825 = vmatpush.bf16.msra.mxu0 %v729
    %826 = vmatmul.bf16.gmra.mxu0 %v746
    %v827 = vpop.f32.mrf.mxu0
    %v828 = vadd.f32 %v779, %v827
    %v829 = vpop.f32.mrf.mxu0
    %v830 = vadd.f32 %v781, %v829
    %831 = vmatmul.bf16.gmra.mxu0 %v749
    %v832 = vpop.f32.mrf.mxu0
    %v833 = vadd.f32 %v784, %v832
    %v834 = vpop.f32.mrf.mxu0
    %v835 = vadd.f32 %v786, %v834
    %836 = vmatmul.bf16.gmra.mxu0 %v752
    %v837 = vpop.f32.mrf.mxu0
    %v838 = vadd.f32 %v789, %v837
    %v839 = vpop.f32.mrf.mxu0
    %v840 = vadd.f32 %v791, %v839
    %841 = vmatmul.bf16.gmra.mxu0 %v755
    %v842 = vpop.f32.mrf.mxu0
    %v843 = vadd.f32 %v794, %v842
    %v844 = vpop.f32.mrf.mxu0
    %v845 = vadd.f32 %v796, %v844
    %846 = vmatmul.bf16.gmra.mxu0 %v758
    %v847 = vpop.f32.mrf.mxu0
    %v848 = vadd.f32 %v799, %v847
    %v849 = vpop.f32.mrf.mxu0
    %v850 = vadd.f32 %v801, %v849
    %851 = vmatmul.bf16.gmra.mxu0 %v761
    %v852 = vpop.f32.mrf.mxu0
    %v853 = vadd.f32 %v804, %v852
    %v854 = vpop.f32.mrf.mxu0
    %v855 = vadd.f32 %v806, %v854
    %856 = vmatmul.bf16.gmra.mxu0 %v764
    %v857 = vpop.f32.mrf.mxu0
    %v858 = vadd.f32 %v809, %v857
    %v859 = vpop.f32.mrf.mxu0
    %v860 = vadd.f32 %v811, %v859
    %861 = vmatmul.bf16.gmra.mxu0 %v767
    %v862 = vpop.f32.mrf.mxu0
    %v863 = vadd.f32 %v814, %v862
    %v864 = vpop.f32.mrf.mxu0
    %v865 = vadd.f32 %v816, %v864
    %866 = vdwg.mxu0
    %v867 = vld [vmem:[%s2] sm:$0x1]
    %v869 = vperm.slane %v867, 0
    %v871 = vadd.f32 %v828, %v869
    %v872 = vadd.f32 %v830, %v869
    %v873 = vadd.f32 %v833, %v869
    %v874 = vadd.f32 %v835, %v869
    %v875 = vadd.f32 %v838, %v869
    %v876 = vadd.f32 %v840, %v869
    %v877 = vadd.f32 %v843, %v869
    %v878 = vadd.f32 %v845, %v869
    %v879 = vadd.f32 %v848, %v869
    %v880 = vadd.f32 %v850, %v869
    %v881 = vadd.f32 %v853, %v869
    %v882 = vadd.f32 %v855, %v869
    %v883 = vadd.f32 %v858, %v869
    %v884 = vadd.f32 %v860, %v869
    %v885 = vadd.f32 %v863, %v869
    %v886 = vadd.f32 %v865, %v869
    %v887 = vmax.f32 %v871, 0.0
    %v888 = vmax.f32 %v872, 0.0
    %v889 = vmax.f32 %v873, 0.0
    %v890 = vmax.f32 %v874, 0.0
    %v891 = vmax.f32 %v875, 0.0
    %v892 = vmax.f32 %v876, 0.0
    %v893 = vmax.f32 %v877, 0.0
    %v894 = vmax.f32 %v878, 0.0
    %v895 = vmax.f32 %v879, 0.0
    %v896 = vmax.f32 %v880, 0.0
    %v897 = vmax.f32 %v881, 0.0
    %v898 = vmax.f32 %v882, 0.0
    %v899 = vmax.f32 %v883, 0.0
    %v900 = vmax.f32 %v884, 0.0
    %v901 = vmax.f32 %v885, 0.0
    %v902 = vmax.f32 %v886, 0.0
    %v903 = vpack.c.bf16 %v888, %v887
    %v904 = vpack.c.bf16 %v890, %v889
    %v905 = vpack.c.bf16 %v892, %v891
    %v906 = vpack.c.bf16 %v894, %v893
    %v907 = vpack.c.bf16 %v896, %v895
    %v908 = vpack.c.bf16 %v898, %v897
    %v909 = vpack.c.bf16 %v900, %v899
    %v910 = vpack.c.bf16 %v902, %v901
    %v911 = vld [vmem:[%s3] sm:$0xf]
    %v912 = vld [vmem:[%s3 + $0x4] sm:$0xf]
    %v913 = vld [vmem:[%s3 + $0x8] sm:$0xf]
    %v914 = vld [vmem:[%s3 + $0xc] sm:$0xf]
    %v915 = vld [vmem:[%s3 + $0x10] sm:$0xf]
    %v916 = vld [vmem:[%s3 + $0x14] sm:$0xf]
    %v917 = vld [vmem:[%s3 + $0x18] sm:$0xf]
    %v918 = vld [vmem:[%s3 + $0x1c] sm:$0xf]
    %v919 = vld [vmem:[%s3 + $0x20] sm:$0xf]
    %v920 = vld [vmem:[%s3 + $0x24] sm:$0xf]
    %v921 = vld [vmem:[%s3 + $0x28] sm:$0xf]
    %v922 = vld [vmem:[%s3 + $0x2c] sm:$0xf]
    %v935 = vunpack.c.l.b16 %v911
    %v936 = vunpack.c.l.b16 %v912
    %v937 = vunpack.c.l.b16 %v913
    %v938 = vunpack.c.l.b16 %v914
    %v939 = vunpack.c.l.b16 %v915
    %v940 = vunpack.c.l.b16 %v916
    %v941 = vunpack.c.l.b16 %v917
    %v942 = vunpack.c.l.b16 %v918
    %v943 = vunpack.c.l.b16 %v919
    %v944 = vunpack.c.l.b16 %v920
    %v945 = vunpack.c.l.b16 %v921
    %v946 = vunpack.c.l.b16 %v922
    %v947 = vpack.c.b16 %v936, %v935
    %v948 = vpack.c.b16 %v938, %v937
    %v949 = vpack.c.b16 %v940, %v939
    %v950 = vpack.c.b16 %v942, %v941
    %v951 = vpack.c.b16 %v944, %v943
    %v952 = vpack.c.b16 %v946, %v945
    %v960 = vsel %vm600, %v903, 0
    %v963 = vsel %vm600, %v904, 0
    %v966 = vsel %vm600, %v905, 0
    %v969 = vsel %vm600, %v906, 0
    %v972 = vsel %vm600, %v907, 0
    %v975 = vsel %vm600, %v908, 0
    %v978 = vsel %vm600, %v909, 0
    %v981 = vsel %vm600, %v910, 0
    %983 = vmatpush.bf16.msra.mxu0 0
    %984 = vmatpush.bf16.msra.mxu0 0
    %985 = vmatpush.bf16.msra.mxu0 %v952
    %986 = vmatpush.bf16.msra.mxu0 %v951
    %987 = vmatpush.bf16.msra.mxu0 %v950
    %988 = vmatpush.bf16.msra.mxu0 %v949
    %989 = vmatpush.bf16.msra.mxu0 %v948
    %990 = vmatpush.bf16.msra.mxu0 %v947
    %991 = vmatmul.bf16.gmra.mxu0 %v960
    %v992 = vpop.f32.mrf.mxu0
    %v993 = vadd.f32 0.0, %v992
    %v994 = vpop.f32.mrf.mxu0
    %v995 = vadd.f32 0.0, %v994
    %996 = vmatmul.bf16.gmra.mxu0 %v963
    %v997 = vpop.f32.mrf.mxu0
    %v998 = vadd.f32 0.0, %v997
    %v999 = vpop.f32.mrf.mxu0
    %v1000 = vadd.f32 0.0, %v999
    %1001 = vmatmul.bf16.gmra.mxu0 %v966
    %v1002 = vpop.f32.mrf.mxu0
    %v1003 = vadd.f32 0.0, %v1002
    %v1004 = vpop.f32.mrf.mxu0
    %v1005 = vadd.f32 0.0, %v1004
    %1006 = vmatmul.bf16.gmra.mxu0 %v969
    %v1007 = vpop.f32.mrf.mxu0
    %v1008 = vadd.f32 0.0, %v1007
    %v1009 = vpop.f32.mrf.mxu0
    %v1010 = vadd.f32 0.0, %v1009
    %1011 = vmatmul.bf16.gmra.mxu0 %v972
    %v1012 = vpop.f32.mrf.mxu0
    %v1013 = vadd.f32 0.0, %v1012
    %v1014 = vpop.f32.mrf.mxu0
    %v1015 = vadd.f32 0.0, %v1014
    %1016 = vmatmul.bf16.gmra.mxu0 %v975
    %v1017 = vpop.f32.mrf.mxu0
    %v1018 = vadd.f32 0.0, %v1017
    %v1019 = vpop.f32.mrf.mxu0
    %v1020 = vadd.f32 0.0, %v1019
    %1021 = vmatmul.bf16.gmra.mxu0 %v978
    %v1022 = vpop.f32.mrf.mxu0
    %v1023 = vadd.f32 0.0, %v1022
    %v1024 = vpop.f32.mrf.mxu0
    %v1025 = vadd.f32 0.0, %v1024
    %1026 = vmatmul.bf16.gmra.mxu0 %v981
    %v1027 = vpop.f32.mrf.mxu0
    %v1028 = vadd.f32 0.0, %v1027
    %v1029 = vpop.f32.mrf.mxu0
    %v1030 = vadd.f32 0.0, %v1029
    %1031 = vdwg.mxu0
    %vm1032 = vcmask 48128
    %v1033 = vsel %vm1032, %v993, -inf
    %1034 = vmax.xlane.f32.xlu0 %v1033
    %v1035 = vpop.xlane.xlu0 %1034
    %v1036 = vsel %vm1032, %v995, -inf
    %1037 = vmax.xlane.f32.xlu0 %v1036
    %v1038 = vpop.xlane.xlu0 %1037
    %v1039 = vsel %vm1032, %v998, -inf
    %1040 = vmax.xlane.f32.xlu0 %v1039
    %v1041 = vpop.xlane.xlu0 %1040
    %v1042 = vsel %vm1032, %v1000, -inf
    %1043 = vmax.xlane.f32.xlu0 %v1042
    %v1044 = vpop.xlane.xlu0 %1043
    %v1045 = vsel %vm1032, %v1003, -inf
    %1046 = vmax.xlane.f32.xlu0 %v1045
    %v1047 = vpop.xlane.xlu0 %1046
    %v1048 = vsel %vm1032, %v1005, -inf
    %1049 = vmax.xlane.f32.xlu0 %v1048
    %v1050 = vpop.xlane.xlu0 %1049
    %v1051 = vsel %vm1032, %v1008, -inf
    %1052 = vmax.xlane.f32.xlu0 %v1051
    %v1053 = vpop.xlane.xlu0 %1052
    %v1054 = vsel %vm1032, %v1010, -inf
    %1055 = vmax.xlane.f32.xlu0 %v1054
    %v1056 = vpop.xlane.xlu0 %1055
    %v1057 = vsel %vm1032, %v1013, -inf
    %1058 = vmax.xlane.f32.xlu0 %v1057
    %v1059 = vpop.xlane.xlu0 %1058
    %v1060 = vsel %vm1032, %v1015, -inf
    %1061 = vmax.xlane.f32.xlu0 %v1060
    %v1062 = vpop.xlane.xlu0 %1061
    %v1063 = vsel %vm1032, %v1018, -inf
    %1064 = vmax.xlane.f32.xlu0 %v1063
    %v1065 = vpop.xlane.xlu0 %1064
    %v1066 = vsel %vm1032, %v1020, -inf
    %1067 = vmax.xlane.f32.xlu0 %v1066
    %v1068 = vpop.xlane.xlu0 %1067
    %v1069 = vsel %vm1032, %v1023, -inf
    %1070 = vmax.xlane.f32.xlu0 %v1069
    %v1071 = vpop.xlane.xlu0 %1070
    %v1072 = vsel %vm1032, %v1025, -inf
    %1073 = vmax.xlane.f32.xlu0 %v1072
    %v1074 = vpop.xlane.xlu0 %1073
    %v1075 = vsel %vm1032, %v1028, -inf
    %1076 = vmax.xlane.f32.xlu0 %v1075
    %v1077 = vpop.xlane.xlu0 %1076
    %v1078 = vsel %vm1032, %v1030, -inf
    %1079 = vmax.xlane.f32.xlu0 %v1078
    %v1080 = vpop.xlane.xlu0 %1079
    %v1081 = vsub.f32 %v993, %v1035
    %v1082 = vsub.f32 %v995, %v1038
    %v1083 = vsub.f32 %v998, %v1041
    %v1084 = vsub.f32 %v1000, %v1044
    %v1085 = vsub.f32 %v1003, %v1047
    %v1086 = vsub.f32 %v1005, %v1050
    %v1087 = vsub.f32 %v1008, %v1053
    %v1088 = vsub.f32 %v1010, %v1056
    %v1089 = vsub.f32 %v1013, %v1059
    %v1090 = vsub.f32 %v1015, %v1062
    %v1091 = vsub.f32 %v1018, %v1065
    %v1092 = vsub.f32 %v1020, %v1068
    %v1093 = vsub.f32 %v1023, %v1071
    %v1094 = vsub.f32 %v1025, %v1074
    %v1095 = vsub.f32 %v1028, %v1077
    %v1096 = vsub.f32 %v1030, %v1080
    %v1097 = vmul.f32 %v1081, 1.442695
    %v1098 = vpow.pop %v1097
    %v1099 = vmul.f32 %v1082, 1.442695
    %v1100 = vpow.pop %v1099
    %v1101 = vmul.f32 %v1083, 1.442695
    %v1102 = vpow.pop %v1101
    %v1103 = vmul.f32 %v1084, 1.442695
    %v1104 = vpow.pop %v1103
    %v1105 = vmul.f32 %v1085, 1.442695
    %v1106 = vpow.pop %v1105
    %v1107 = vmul.f32 %v1086, 1.442695
    %v1108 = vpow.pop %v1107
    %v1109 = vmul.f32 %v1087, 1.442695
    %v1110 = vpow.pop %v1109
    %v1111 = vmul.f32 %v1088, 1.442695
    %v1112 = vpow.pop %v1111
    %v1113 = vmul.f32 %v1089, 1.442695
    %v1114 = vpow.pop %v1113
    %v1115 = vmul.f32 %v1090, 1.442695
    %v1116 = vpow.pop %v1115
    %v1117 = vmul.f32 %v1091, 1.442695
    %v1118 = vpow.pop %v1117
    %v1119 = vmul.f32 %v1092, 1.442695
    %v1120 = vpow.pop %v1119
    %v1121 = vmul.f32 %v1093, 1.442695
    %v1122 = vpow.pop %v1121
    %v1123 = vmul.f32 %v1094, 1.442695
    %v1124 = vpow.pop %v1123
    %v1125 = vmul.f32 %v1095, 1.442695
    %v1126 = vpow.pop %v1125
    %v1127 = vmul.f32 %v1096, 1.442695
    %v1128 = vpow.pop %v1127
    %v1129 = vsel %vm1032, %v1098, 0.0
    %1130 = vadd.xlane.f32.xlu0 %v1129
    %v1131 = vpop.xlane.xlu0 %1130
    %v1132 = vsel %vm1032, %v1100, 0.0
    %1133 = vadd.xlane.f32.xlu0 %v1132
    %v1134 = vpop.xlane.xlu0 %1133
    %v1135 = vsel %vm1032, %v1102, 0.0
    %1136 = vadd.xlane.f32.xlu0 %v1135
    %v1137 = vpop.xlane.xlu0 %1136
    %v1138 = vsel %vm1032, %v1104, 0.0
    %1139 = vadd.xlane.f32.xlu0 %v1138
    %v1140 = vpop.xlane.xlu0 %1139
    %v1141 = vsel %vm1032, %v1106, 0.0
    %1142 = vadd.xlane.f32.xlu0 %v1141
    %v1143 = vpop.xlane.xlu0 %1142
    %v1144 = vsel %vm1032, %v1108, 0.0
    %1145 = vadd.xlane.f32.xlu0 %v1144
    %v1146 = vpop.xlane.xlu0 %1145
    %v1147 = vsel %vm1032, %v1110, 0.0
    %1148 = vadd.xlane.f32.xlu0 %v1147
    %v1149 = vpop.xlane.xlu0 %1148
    %v1150 = vsel %vm1032, %v1112, 0.0
    %1151 = vadd.xlane.f32.xlu0 %v1150
    %v1152 = vpop.xlane.xlu0 %1151
    %v1153 = vsel %vm1032, %v1114, 0.0
    %1154 = vadd.xlane.f32.xlu0 %v1153
    %v1155 = vpop.xlane.xlu0 %1154
    %v1156 = vsel %vm1032, %v1116, 0.0
    %1157 = vadd.xlane.f32.xlu0 %v1156
    %v1158 = vpop.xlane.xlu0 %1157
    %v1159 = vsel %vm1032, %v1118, 0.0
    %1160 = vadd.xlane.f32.xlu0 %v1159
    %v1161 = vpop.xlane.xlu0 %1160
    %v1162 = vsel %vm1032, %v1120, 0.0
    %1163 = vadd.xlane.f32.xlu0 %v1162
    %v1164 = vpop.xlane.xlu0 %1163
    %v1165 = vsel %vm1032, %v1122, 0.0
    %1166 = vadd.xlane.f32.xlu0 %v1165
    %v1167 = vpop.xlane.xlu0 %1166
    %v1168 = vsel %vm1032, %v1124, 0.0
    %1169 = vadd.xlane.f32.xlu0 %v1168
    %v1170 = vpop.xlane.xlu0 %1169
    %v1171 = vsel %vm1032, %v1126, 0.0
    %1172 = vadd.xlane.f32.xlu0 %v1171
    %v1173 = vpop.xlane.xlu0 %1172
    %v1174 = vsel %vm1032, %v1128, 0.0
    %1175 = vadd.xlane.f32.xlu0 %v1174
    %v1176 = vpop.xlane.xlu0 %1175
    %v1177 = vrcp.pop %v1131
    %v1178 = vrcp.pop %v1134
    %v1179 = vrcp.pop %v1137
    %v1180 = vrcp.pop %v1140
    %v1181 = vrcp.pop %v1143
    %v1182 = vrcp.pop %v1146
    %v1183 = vrcp.pop %v1149
    %v1184 = vrcp.pop %v1152
    %v1185 = vrcp.pop %v1155
    %v1186 = vrcp.pop %v1158
    %v1187 = vrcp.pop %v1161
    %v1188 = vrcp.pop %v1164
    %v1189 = vrcp.pop %v1167
    %v1190 = vrcp.pop %v1170
    %v1191 = vrcp.pop %v1173
    %v1192 = vrcp.pop %v1176
    %v1193 = vmul.f32 %v1098, %v1177
    %v1194 = vmul.f32 %v1100, %v1178
    %v1195 = vmul.f32 %v1102, %v1179
    %v1196 = vmul.f32 %v1104, %v1180
    %v1197 = vmul.f32 %v1106, %v1181
    %v1198 = vmul.f32 %v1108, %v1182
    %v1199 = vmul.f32 %v1110, %v1183
    %v1200 = vmul.f32 %v1112, %v1184
    %v1201 = vmul.f32 %v1114, %v1185
    %v1202 = vmul.f32 %v1116, %v1186
    %v1203 = vmul.f32 %v1118, %v1187
    %v1204 = vmul.f32 %v1120, %v1188
    %v1205 = vmul.f32 %v1122, %v1189
    %v1206 = vmul.f32 %v1124, %v1190
    %v1207 = vmul.f32 %v1126, %v1191
    %v1208 = vmul.f32 %v1128, %v1192
    %1225 = vrot.lane.b32.xlu0 %v828, 32
    %v1226 = vpop.permute.xlu0 %1225
    %1227 = vrot.lane.b32.xlu0 %v830, 32
    %v1228 = vpop.permute.xlu0 %1227
    %1229 = vrot.lane.b32.xlu0 %v833, 32
    %v1230 = vpop.permute.xlu0 %1229
    %1231 = vrot.lane.b32.xlu0 %v835, 32
    %v1232 = vpop.permute.xlu0 %1231
    %1233 = vrot.lane.b32.xlu0 %v838, 32
    %v1234 = vpop.permute.xlu0 %1233
    %1235 = vrot.lane.b32.xlu0 %v840, 32
    %v1236 = vpop.permute.xlu0 %1235
    %1237 = vrot.lane.b32.xlu0 %v843, 32
    %v1238 = vpop.permute.xlu0 %1237
    %1239 = vrot.lane.b32.xlu0 %v845, 32
    %v1240 = vpop.permute.xlu0 %1239
    %1241 = vrot.lane.b32.xlu0 %v848, 32
    %v1242 = vpop.permute.xlu0 %1241
    %1243 = vrot.lane.b32.xlu0 %v850, 32
    %v1244 = vpop.permute.xlu0 %1243
    %1245 = vrot.lane.b32.xlu0 %v853, 32
    %v1246 = vpop.permute.xlu0 %1245
    %1247 = vrot.lane.b32.xlu0 %v855, 32
    %v1248 = vpop.permute.xlu0 %1247
    %1249 = vrot.lane.b32.xlu0 %v858, 32
    %v1250 = vpop.permute.xlu0 %1249
    %1251 = vrot.lane.b32.xlu0 %v860, 32
    %v1252 = vpop.permute.xlu0 %1251
    %1253 = vrot.lane.b32.xlu0 %v863, 32
    %v1254 = vpop.permute.xlu0 %1253
    %1255 = vrot.lane.b32.xlu0 %v865, 32
    %v1256 = vpop.permute.xlu0 %1255
    %v1273 = vmul.f32 %v1193, %v1226
    %v1274 = vmul.f32 %v1194, %v1228
    %v1275 = vmul.f32 %v1195, %v1230
    %v1276 = vmul.f32 %v1196, %v1232
    %v1277 = vmul.f32 %v1197, %v1234
    %v1278 = vmul.f32 %v1198, %v1236
    %v1279 = vmul.f32 %v1199, %v1238
    %v1280 = vmul.f32 %v1200, %v1240
    %v1281 = vmul.f32 %v1201, %v1242
    %v1282 = vmul.f32 %v1202, %v1244
    %v1283 = vmul.f32 %v1203, %v1246
    %v1284 = vmul.f32 %v1204, %v1248
    %v1285 = vmul.f32 %v1205, %v1250
    %v1286 = vmul.f32 %v1206, %v1252
    %v1287 = vmul.f32 %v1207, %v1254
    %v1288 = vmul.f32 %v1208, %v1256
    %v1289 = vsel %vm1032, %v1273, 0.0
    %1290 = vadd.xlane.f32.xlu0 %v1289
    %v1291 = vpop.xlane.xlu0 %1290
    %v1292 = vsel %vm1032, %v1274, 0.0
    %1293 = vadd.xlane.f32.xlu0 %v1292
    %v1294 = vpop.xlane.xlu0 %1293
    %v1295 = vsel %vm1032, %v1275, 0.0
    %1296 = vadd.xlane.f32.xlu0 %v1295
    %v1297 = vpop.xlane.xlu0 %1296
    %v1298 = vsel %vm1032, %v1276, 0.0
    %1299 = vadd.xlane.f32.xlu0 %v1298
    %v1300 = vpop.xlane.xlu0 %1299
    %v1301 = vsel %vm1032, %v1277, 0.0
    %1302 = vadd.xlane.f32.xlu0 %v1301
    %v1303 = vpop.xlane.xlu0 %1302
    %v1304 = vsel %vm1032, %v1278, 0.0
    %1305 = vadd.xlane.f32.xlu0 %v1304
    %v1306 = vpop.xlane.xlu0 %1305
    %v1307 = vsel %vm1032, %v1279, 0.0
    %1308 = vadd.xlane.f32.xlu0 %v1307
    %v1309 = vpop.xlane.xlu0 %1308
    %v1310 = vsel %vm1032, %v1280, 0.0
    %1311 = vadd.xlane.f32.xlu0 %v1310
    %v1312 = vpop.xlane.xlu0 %1311
    %v1313 = vsel %vm1032, %v1281, 0.0
    %1314 = vadd.xlane.f32.xlu0 %v1313
    %v1315 = vpop.xlane.xlu0 %1314
    %v1316 = vsel %vm1032, %v1282, 0.0
    %1317 = vadd.xlane.f32.xlu0 %v1316
    %v1318 = vpop.xlane.xlu0 %1317
    %v1319 = vsel %vm1032, %v1283, 0.0
    %1320 = vadd.xlane.f32.xlu0 %v1319
    %v1321 = vpop.xlane.xlu0 %1320
    %v1322 = vsel %vm1032, %v1284, 0.0
    %1323 = vadd.xlane.f32.xlu0 %v1322
    %v1324 = vpop.xlane.xlu0 %1323
    %v1325 = vsel %vm1032, %v1285, 0.0
    %1326 = vadd.xlane.f32.xlu0 %v1325
    %v1327 = vpop.xlane.xlu0 %1326
    %v1328 = vsel %vm1032, %v1286, 0.0
    %1329 = vadd.xlane.f32.xlu0 %v1328
    %v1330 = vpop.xlane.xlu0 %1329
    %v1331 = vsel %vm1032, %v1287, 0.0
    %1332 = vadd.xlane.f32.xlu0 %v1331
    %v1333 = vpop.xlane.xlu0 %1332
    %v1334 = vsel %vm1032, %v1288, 0.0
    %1335 = vadd.xlane.f32.xlu0 %v1334
    %v1336 = vpop.xlane.xlu0 %1335
    %s1337 = sld [smem:[#allocation2]]
    %v1338 = vstv %s1337
    %v1339 = vadd.f32 %v1291, %v1338
    %v1340 = vadd.f32 %v1294, %v1338
    %v1341 = vadd.f32 %v1297, %v1338
    %v1342 = vadd.f32 %v1300, %v1338
    %v1343 = vadd.f32 %v1303, %v1338
    %v1344 = vadd.f32 %v1306, %v1338
    %v1345 = vadd.f32 %v1309, %v1338
    %v1346 = vadd.f32 %v1312, %v1338
    %v1347 = vadd.f32 %v1315, %v1338
    %v1348 = vadd.f32 %v1318, %v1338
    %v1349 = vadd.f32 %v1321, %v1338
    %v1350 = vadd.f32 %v1324, %v1338
    %v1351 = vadd.f32 %v1327, %v1338
    %v1352 = vadd.f32 %v1330, %v1338
    %v1353 = vadd.f32 %v1333, %v1338
    %v1354 = vadd.f32 %v1336, %v1338
    %vm1355 = vcmask 7168
    %1356 = vst.msk [vmem:[%s5] sm:$0xff] %vm1355, %v1339
    %1357 = vst.msk [vmem:[%s5 + $0x8] sm:$0xff] %vm1355, %v1340
    %1358 = vst.msk [vmem:[%s5 + $0x10] sm:$0xff] %vm1355, %v1341
    %1359 = vst.msk [vmem:[%s5 + $0x18] sm:$0xff] %vm1355, %v1342
    %1360 = vst.msk [vmem:[%s5 + $0x20] sm:$0xff] %vm1355, %v1343
    %1361 = vst.msk [vmem:[%s5 + $0x28] sm:$0xff] %vm1355, %v1344
    %1362 = vst.msk [vmem:[%s5 + $0x30] sm:$0xff] %vm1355, %v1345
    %1363 = vst.msk [vmem:[%s5 + $0x38] sm:$0xff] %vm1355, %v1346
    %1364 = vst.msk [vmem:[%s5 + $0x40] sm:$0xff] %vm1355, %v1347
    %1365 = vst.msk [vmem:[%s5 + $0x48] sm:$0xff] %vm1355, %v1348
    %1366 = vst.msk [vmem:[%s5 + $0x50] sm:$0xff] %vm1355, %v1349
    %1367 = vst.msk [vmem:[%s5 + $0x58] sm:$0xff] %vm1355, %v1350
    %1368 = vst.msk [vmem:[%s5 + $0x60] sm:$0xff] %vm1355, %v1351
    %1369 = vst.msk [vmem:[%s5 + $0x68] sm:$0xff] %vm1355, %v1352
    %1370 = vst.msk [vmem:[%s5 + $0x70] sm:$0xff] %vm1355, %v1353
    %1371 = vst.msk [vmem:[%s5 + $0x78] sm:$0xff] %vm1355, %v1354
    // Predicated region
    $region30: #{tpu_custom_call.1} parent=1 // pred_check
      _
    $region31: #{tpu_custom_call.1} parent=1 // pred_check_branch
      %1373 = sbr.rel (0) target = $region33
    $region32: #{tpu_custom_call.1} parent=1 // pred_region
      _
    $region33: #{tpu_custom_call.1} parent=1 // pred_fallthru
      _
    // Predicated region
    $region34: #{tpu_custom_call.1} parent=1 // pred_check
      _
    $region35: #{tpu_custom_call.1} parent=1 // pred_check_branch
      %1375 = sbr.rel (0) target = $region37
    $region36: #{tpu_custom_call.1} parent=1 // pred_region
      _
    $region37: #{tpu_custom_call.1} parent=1 // pred_fallthru
      _
    %1376 = vsyncpa [#allocation4], 1
    %1377 = vsyncpa [#allocation6], 1

</llo_original>
